<compile_context>
chip_gen: v5e
topology: v5e:2x2
jax: 0.10.0
libtpu: 0.0.40
codegen_flags: <defaults>
</compile_context>

<pallas_src>
import functools
import math

import jax
import jax.numpy as jnp
from jax.experimental import pallas as pl
from jax.experimental.pallas import tpu as pltpu


def _mlp_kernel(x_ref, w1_ref, b1_ref, w2_ref, b2_ref, o_ref, *, mxu_dtype):
    # Hidden layer: (TB, D) @ (D, HP) -> f32 acc, then bias + ReLU in f32.
    h = jnp.dot(
        x_ref[...].astype(mxu_dtype),
        w1_ref[...].astype(mxu_dtype),
        preferred_element_type=jnp.float32,
    )
    h = jnp.maximum(h + b1_ref[...], 0.0)

    # Output layer: (TB, HP) @ (HP, OP) -> f32 acc, then bias.
    z = jnp.dot(
        h.astype(mxu_dtype),
        w2_ref[...].astype(mxu_dtype),
        preferred_element_type=jnp.float32,
    )
    z = z + b2_ref[...]

    # sigmoid(z) = 1 / (1 + exp(-z)); exp + approx reciprocal both hit the EUP.
    y = pl.reciprocal(1.0 + jnp.exp(-z), approx=True)
    o_ref[...] = y.astype(o_ref.dtype)


def _round_up(n, m):
    return ((n + m - 1) // m) * m


def logistic_regression_forward(x, w1, b1, w2, b2, *, block_b=512, use_bf16=True):
    """Fused Linear(n_inputs,100)->ReLU->Linear(100,n_output)->Sigmoid forward.

    x:  [B, n_inputs] float32
    w1: [n_inputs, 100], b1: [1, 100]   (W stored as [in, out])
    w2: [100, n_output], b2: [1, n_output]
    returns [B, n_output] float32
    """
    B, D = x.shape
    H = w1.shape[1]
    n_output = w2.shape[1]
    assert w1.shape == (D, H) and b1.shape[-1] == H
    assert w2.shape[0] == H and b2.shape[-1] == n_output

    LANE = 128
    HP = _round_up(H, LANE)          # hidden 100 -> 128 (lane aligned)
    OP = _round_up(n_output, LANE)   # lane-dense output block

    # Batch tile: multiple of 8 sublanes, <= block_b; pad B up to a multiple of TB.
    TB = _round_up(min(block_b, _round_up(B, 8)), 8)
    Bp = TB * pl.cdiv(B, TB)

    mxu_dtype = jnp.bfloat16 if use_bf16 else jnp.float32

    # Zero-pad params (math unchanged); weights cast to MXU dtype, biases stay f32.
    w1p = jnp.pad(w1, ((0, 0), (0, HP - H))).astype(mxu_dtype)
    b1p = jnp.pad(b1.reshape(1, H), ((0, 0), (0, HP - H))).astype(jnp.float32)
    w2p = jnp.pad(w2, ((0, HP - H), (0, OP - n_output))).astype(mxu_dtype)
    b2p = jnp.pad(b2.reshape(1, n_output), ((0, 0), (0, OP - n_output))).astype(jnp.float32)

    xp = x
    if Bp != B:
        xp = jnp.pad(xp, ((0, Bp - B), (0, 0)))
    xp = xp.astype(mxu_dtype)

    grid = (Bp // TB,)
    kernel = functools.partial(_mlp_kernel, mxu_dtype=mxu_dtype)

    y_pad = pl.pallas_call(
        kernel,
        out_shape=jax.ShapeDtypeStruct((Bp, OP), jnp.float32),
        grid=grid,
        in_specs=[
            # x: streamed per batch tile (auto double-buffered by the pipeline).
            pl.BlockSpec((TB, D), lambda i: (i, 0)),
            # Weights / biases: same block every step -> VMEM resident, DMA'd once.
            pl.BlockSpec((D, HP), lambda i: (0, 0)),
            pl.BlockSpec((1, HP), lambda i: (0, 0)),
            pl.BlockSpec((HP, OP), lambda i: (0, 0)),
            pl.BlockSpec((1, OP), lambda i: (0, 0)),
        ],
        out_specs=pl.BlockSpec((TB, OP), lambda i: (i, 0)),
        compiler_params=pltpu.CompilerParams(
            dimension_semantics=("parallel",),  # shard batch tiles across TCs (v7x)
        ),
    )(xp, w1p, b1p, w2p, b2p)

    # Strip batch padding and the lane padding of the output dim.
    return y_pad[:B, :n_output]


def init_params(key, n_inputs, n_output, hidden=100):
    """Deterministic init matching torch.nn.Linear's U(-1/sqrt(fan_in), 1/sqrt(fan_in))."""
    k1, k2, k3, k4 = jax.random.split(key, 4)
    bound1 = 1.0 / math.sqrt(n_inputs)
    bound2 = 1.0 / math.sqrt(hidden)
    w1 = jax.random.uniform(k1, (n_inputs, hidden), jnp.float32, -bound1, bound1)
    b1 = jax.random.uniform(k2, (1, hidden), jnp.float32, -bound1, bound1)
    w2 = jax.random.uniform(k3, (hidden, n_output), jnp.float32, -bound2, bound2)
    b2 = jax.random.uniform(k4, (1, n_output), jnp.float32, -bound2, bound2)
    return w1, b1, w2, b2


if __name__ == "__main__":
    key = jax.random.PRNGKey(0)
    k_x, k_p = jax.random.split(key)

    # Small shapes; B is deliberately NOT a multiple of the batch tile so the
    # padding / multi-step-grid path is exercised (block_b=64 -> 4 grid steps).
    B, n_inputs, n_output = 200, 32, 3
    x = jax.random.normal(k_x, (B, n_inputs), jnp.float32)
    w1, b1, w2, b2 = init_params(k_p, n_inputs, n_output)

    y = logistic_regression_forward(x, w1, b1, w2, b2, block_b=64, use_bf16=True)
    y = jax.block_until_ready(y)
    assert y.shape == (B, n_output)

    # Reference 1: same bf16-operand / f32-accumulation math in plain JAX.
    xb = x.astype(jnp.bfloat16)
    w1b = w1.astype(jnp.bfloat16)
    w2b = w2.astype(jnp.bfloat16)
    h_ref = jnp.maximum(jnp.dot(xb, w1b, preferred_element_type=jnp.float32) + b1, 0.0)
    z_ref = jnp.dot(h_ref.astype(jnp.bfloat16), w2b, preferred_element_type=jnp.float32) + b2
    y_ref_bf16 = jax.nn.sigmoid(z_ref)

    # Reference 2: pure f32 PyTorch-module semantics.
    y_ref_f32 = jax.nn.sigmoid(jnp.maximum(x @ w1 + b1, 0.0) @ w2 + b2)

    err_bf16 = float(jnp.max(jnp.abs(y - y_ref_bf16)))
    err_f32 = float(jnp.max(jnp.abs(y - y_ref_f32)))
    assert err_bf16 < 1e-2, f"mismatch vs bf16-consistent reference: {err_bf16}"
    assert err_f32 < 5e-2, f"mismatch vs f32 reference: {err_f32}"

    print("KERNEL_OK")
</pallas_src>

<mosaic_0001>
module attributes {stable_mosaic.version = 11 : i64} {
  func.func @_mlp_kernel(%arg0: i32, %arg1: memref<64x32xbf16, #tpu.memory_space<vmem>>, %arg2: memref<32x128xbf16, #tpu.memory_space<vmem>>, %arg3: memref<1x128xf32, #tpu.memory_space<vmem>>, %arg4: memref<128x128xbf16, #tpu.memory_space<vmem>>, %arg5: memref<1x128xf32, #tpu.memory_space<vmem>>, %arg6: memref<64x128xf32, #tpu.memory_space<vmem>>) attributes {dimension_semantics = [#tpu.dimension_semantics<parallel>], iteration_bounds = array<i64: 4>, scalar_prefetch = 0 : i64, scratch_operands = 0 : i64, tpu.core_type = #tpu.core_type<tc>, window_params = [{transform_indices = @transform_0, window_bounds = array<i64: 64, 32>}, {pipeline_mode = #tpu.pipeline_mode<synchronous>, transform_indices = @transform_1, window_bounds = array<i64: 32, 128>}, {pipeline_mode = #tpu.pipeline_mode<synchronous>, transform_indices = @transform_2, window_bounds = array<i64: 1, 128>}, {pipeline_mode = #tpu.pipeline_mode<synchronous>, transform_indices = @transform_3, window_bounds = array<i64: 128, 128>}, {pipeline_mode = #tpu.pipeline_mode<synchronous>, transform_indices = @transform_4, window_bounds = array<i64: 1, 128>}, {transform_indices = @transform_5, window_bounds = array<i64: 64, 128>}]} {
    %c0 = arith.constant 0 : index
    %c0_0 = arith.constant 0 : index
    %0 = vector.load %arg1[%c0, %c0_0] : memref<64x32xbf16, #tpu.memory_space<vmem>>, vector<64x32xbf16>
    %c0_1 = arith.constant 0 : index
    %c0_2 = arith.constant 0 : index
    %1 = vector.load %arg2[%c0_1, %c0_2] : memref<32x128xbf16, #tpu.memory_space<vmem>>, vector<32x128xbf16>
    %cst = arith.constant dense<0.000000e+00> : vector<64x128xf32>
    %2 = tpu.matmul %0, %1, %cst {dimension_numbers = #tpu.dot_dimension_numbers<[1], [0], [0], [1], [0, 0, 1, 1], [], []>} : vector<64x32xbf16>, vector<32x128xbf16>, vector<64x128xf32> -> vector<64x128xf32>
    %c0_3 = arith.constant 0 : index
    %c0_4 = arith.constant 0 : index
    %3 = vector.load %arg3[%c0_3, %c0_4] : memref<1x128xf32, #tpu.memory_space<vmem>>, vector<1x128xf32>
    %4 = vector.broadcast %3 : vector<1x128xf32> to vector<64x128xf32>
    %5 = arith.addf %2, %4 : vector<64x128xf32>
    %cst_5 = arith.constant 0.000000e+00 : f32
    %6 = vector.broadcast %cst_5 : f32 to vector<64x128xf32>
    %7 = arith.maximumf %5, %6 : vector<64x128xf32>
    %8 = arith.truncf %7 : vector<64x128xf32> to vector<64x128xbf16>
    %c0_6 = arith.constant 0 : index
    %c0_7 = arith.constant 0 : index
    %9 = vector.load %arg4[%c0_6, %c0_7] : memref<128x128xbf16, #tpu.memory_space<vmem>>, vector<128x128xbf16>
    %cst_8 = arith.constant dense<0.000000e+00> : vector<64x128xf32>
    %10 = tpu.matmul %8, %9, %cst_8 {dimension_numbers = #tpu.dot_dimension_numbers<[1], [0], [0], [1], [0, 0, 1, 1], [], []>} : vector<64x128xbf16>, vector<128x128xbf16>, vector<64x128xf32> -> vector<64x128xf32>
    %c0_9 = arith.constant 0 : index
    %c0_10 = arith.constant 0 : index
    %11 = vector.load %arg5[%c0_9, %c0_10] : memref<1x128xf32, #tpu.memory_space<vmem>>, vector<1x128xf32>
    %12 = vector.broadcast %11 : vector<1x128xf32> to vector<64x128xf32>
    %13 = arith.addf %10, %12 : vector<64x128xf32>
    %cst_11 = arith.constant 0.000000e+00 : f32
    %14 = vector.broadcast %cst_11 : f32 to vector<64x128xf32>
    %15 = arith.subf %14, %13 : vector<64x128xf32>
    %16 = math.exp %15 : vector<64x128xf32>
    %cst_12 = arith.constant 1.000000e+00 : f32
    %17 = vector.broadcast %cst_12 : f32 to vector<64x128xf32>
    %18 = arith.addf %17, %16 : vector<64x128xf32>
    %19 = tpu.reciprocal %18 {approx = true} : vector<64x128xf32> -> vector<64x128xf32>
    %c0_13 = arith.constant 0 : index
    %c0_14 = arith.constant 0 : index
    %20 = vector.load %arg6[%c0_13, %c0_14] : memref<64x128xf32, #tpu.memory_space<vmem>>, vector<64x128xf32>
    tpu.vector_store %arg6[%c0_13, %c0_14], %19 {strides = array<i32>} : memref<64x128xf32, #tpu.memory_space<vmem>>, vector<64x128xf32>,
    return
  }
  func.func @transform_0(%arg0: i32) -> (i32, i32) {
    %c0_i32 = arith.constant 0 : i32
    %c0_i32_0 = arith.constant 0 : i32
    return %arg0, %c0_i32 : i32, i32
  }
  func.func @transform_1(%arg0: i32) -> (i32, i32) {
    %c0_i32 = arith.constant 0 : i32
    %c0_i32_0 = arith.constant 0 : i32
    %c0_i32_1 = arith.constant 0 : i32
    return %c0_i32, %c0_i32_0 : i32, i32
  }
  func.func @transform_2(%arg0: i32) -> (i32, i32) {
    %c0_i32 = arith.constant 0 : i32
    %c0_i32_0 = arith.constant 0 : i32
    %c0_i32_1 = arith.constant 0 : i32
    return %c0_i32, %c0_i32_0 : i32, i32
  }
  func.func @transform_3(%arg0: i32) -> (i32, i32) {
    %c0_i32 = arith.constant 0 : i32
    %c0_i32_0 = arith.constant 0 : i32
    %c0_i32_1 = arith.constant 0 : i32
    return %c0_i32, %c0_i32_0 : i32, i32
  }
  func.func @transform_4(%arg0: i32) -> (i32, i32) {
    %c0_i32 = arith.constant 0 : i32
    %c0_i32_0 = arith.constant 0 : i32
    %c0_i32_1 = arith.constant 0 : i32
    return %c0_i32, %c0_i32_0 : i32, i32
  }
  func.func @transform_5(%arg0: i32) -> (i32, i32) {
    %c0_i32 = arith.constant 0 : i32
    %c0_i32_0 = arith.constant 0 : i32
    return %arg0, %c0_i32 : i32, i32
  }
}

</mosaic_0001>

<llo_original>
// kernel: tpu_custom_call.1
$region0: #{tpu_custom_call.1}
  #allocation0 [shape = 'u32[]', space=smem, size = 0x4, offset = 0x4, fixed_abs, tag = 'smem constant byte address 0x4 - core index']
  #allocation1 [shape = 'u32[72,128]{1,0:T(1,128)}', space=vmem, size = 0x9000, scoped, tag = 'internal scratch']
  %s0 = inlined_call_operand.vmem [shape: bf16[256,32], index: 0, kind: input, shape index: {}]
  %s1 = inlined_call_operand.vmem [shape: bf16[32,128], index: 1, kind: input, shape index: {}]
  %s2 = inlined_call_operand.vmem [shape: f32[1,128], index: 2, kind: input, shape index: {}]
  %s3 = inlined_call_operand.vmem [shape: bf16[128,128], index: 3, kind: input, shape index: {}]
  %s4 = inlined_call_operand.vmem [shape: f32[1,128], index: 4, kind: input, shape index: {}]
  %s5 = inlined_call_operand.hbm [shape: f32[256,128], index: 5, kind: output, shape index: {}]
  %s6 = sld [smem:[#allocation0]]
  $region53: #{tpu_custom_call.1} parent=0
    _
  %s8 = ssub.s32 1, %s6
  %s9 = scalar_select 0, %s8, %s6
  $region1: #{tpu_custom_call.1} parent=0
    #allocation2 [shape = 'u8[65536]{0}', space=vmem, size = 0x10000, scoped, tag = 'output window, operand 0']
    #allocation3 [shape = 's32[2]{0}', space=sflag, size = 0x8, scoped, tag = 'scoped memory for tpu_custom_call.1']
    %10 = vsyncpa [#allocation3], 0
    %s11 = scalar_lea.sflag [#allocation3], 1
    %12 = vsyncpa %s11, 0
    loop: start=0, step=1, limit=6
    $region2: #{tpu_custom_call.1} parent=1 // loop_pre_header
      _
    $region3: #{tpu_custom_call.1} parent=1 // loop_header
      %s14 = sphi 0, %s18
      %p15 = scmp.ge.s32.totalorder %s14, 6
      %s24 = sphi 0, %s26
      %s27 = sphi 0, %s24
      %s28 = sphi 0, %s27
      %s44 = sphi 0, %s28
      %s48 = sphi 0, %s48
      %s50 = sphi 0, %s48
      %s51 = sphi 0, %s50
      %s65 = sphi 0, %s51
      %s69 = sphi 0, %s69
      %s71 = sphi 0, %s69
      %s72 = sphi 0, %s71
      %s86 = sphi 0, %s72
      %s90 = sphi 0, %s90
      %s92 = sphi 0, %s90
      %s93 = sphi 0, %s92
      %s107 = sphi 0, %s93
      %s111 = sphi 0, %s111
      %s113 = sphi 0, %s111
      %s114 = sphi 0, %s113
      %s128 = sphi 0, %s114
      %s134 = sphi 0, %s136
      %s137 = sphi 0, %s134
      %s138 = sphi 0, %s137
      %s154 = sphi 0, %s138
    $region4: #{tpu_custom_call.1} parent=1 // loop_header_branch
      %17 = sbr.rel (%p15) target = $region8
    $region5: #{tpu_custom_call.1} parent=1 // loop_body
      %s19 = ssub.s32 %s14, 1
      %s20 = ssub.s32 %s14, 2
      %s21 = sadd.s32 %s14, 1
      %s22 = ssub.s32 %s14, %s21
      %p23 = scmp.eq.s32.totalorder %s22, 0
      %s25 = sadd.s32 %s24, 1
      %s26 = scalar_select %p23, %s24, %s25
      %p29 = pneg %p23
      %p30 = scmp.eq.s32.totalorder %s14, 3
      %p31 = por %p29, %p30
      %p32 = scmp.ne.s32.totalorder %s24, %s27
      %p33 = scmp.eq.s32.totalorder %s14, 0
      %p34 = por %p32, %p33
      %p35 = scmp.ne.s32.totalorder %s24, %s27
      %p36 = scmp.eq.s32.totalorder %s19, 3
      %p37 = por %p35, %p36
      %p38 = scmp.ne.s32.totalorder %s27, %s28
      %p39 = scmp.eq.s32.totalorder %s19, 0
      %p40 = por %p38, %p39
      %p41 = scmp.ne.s32.totalorder %s27, %s28
      %p42 = scmp.eq.s32.totalorder %s20, 3
      %p43 = por %p41, %p42
      %p45 = scmp.ne.s32.totalorder %s28, %s44
      %p46 = scmp.eq.s32.totalorder %s20, 0
      %p47 = por %p45, %p46
      %s49 = sadd.s32 %s48, 1
      %p52 = scmp.eq.s32.totalorder %s14, 3
      %p53 = scmp.ne.s32.totalorder %s48, %s50
      %p54 = scmp.eq.s32.totalorder %s14, 0
      %p55 = por %p53, %p54
      %p56 = scmp.ne.s32.totalorder %s48, %s50
      %p57 = scmp.eq.s32.totalorder %s19, 3
      %p58 = por %p56, %p57
      %p59 = scmp.ne.s32.totalorder %s50, %s51
      %p60 = scmp.eq.s32.totalorder %s19, 0
      %p61 = por %p59, %p60
      %p62 = scmp.ne.s32.totalorder %s50, %s51
      %p63 = scmp.eq.s32.totalorder %s20, 3
      %p64 = por %p62, %p63
      %p66 = scmp.ne.s32.totalorder %s51, %s65
      %p67 = scmp.eq.s32.totalorder %s20, 0
      %p68 = por %p66, %p67
      %s70 = sadd.s32 %s69, 1
      %p73 = scmp.eq.s32.totalorder %s14, 3
      %p74 = scmp.ne.s32.totalorder %s69, %s71
      %p75 = scmp.eq.s32.totalorder %s14, 0
      %p76 = por %p74, %p75
      %p77 = scmp.ne.s32.totalorder %s69, %s71
      %p78 = scmp.eq.s32.totalorder %s19, 3
      %p79 = por %p77, %p78
      %p80 = scmp.ne.s32.totalorder %s71, %s72
      %p81 = scmp.eq.s32.totalorder %s19, 0
      %p82 = por %p80, %p81
      %p83 = scmp.ne.s32.totalorder %s71, %s72
      %p84 = scmp.eq.s32.totalorder %s20, 3
      %p85 = por %p83, %p84
      %p87 = scmp.ne.s32.totalorder %s72, %s86
      %p88 = scmp.eq.s32.totalorder %s20, 0
      %p89 = por %p87, %p88
      %s91 = sadd.s32 %s90, 1
      %p94 = scmp.eq.s32.totalorder %s14, 3
      %p95 = scmp.ne.s32.totalorder %s90, %s92
      %p96 = scmp.eq.s32.totalorder %s14, 0
      %p97 = por %p95, %p96
      %p98 = scmp.ne.s32.totalorder %s90, %s92
      %p99 = scmp.eq.s32.totalorder %s19, 3
      %p100 = por %p98, %p99
      %p101 = scmp.ne.s32.totalorder %s92, %s93
      %p102 = scmp.eq.s32.totalorder %s19, 0
      %p103 = por %p101, %p102
      %p104 = scmp.ne.s32.totalorder %s92, %s93
      %p105 = scmp.eq.s32.totalorder %s20, 3
      %p106 = por %p104, %p105
      %p108 = scmp.ne.s32.totalorder %s93, %s107
      %p109 = scmp.eq.s32.totalorder %s20, 0
      %p110 = por %p108, %p109
      %s112 = sadd.s32 %s111, 1
      %p115 = scmp.eq.s32.totalorder %s14, 3
      %p116 = scmp.ne.s32.totalorder %s111, %s113
      %p117 = scmp.eq.s32.totalorder %s14, 0
      %p118 = por %p116, %p117
      %p119 = scmp.ne.s32.totalorder %s111, %s113
      %p120 = scmp.eq.s32.totalorder %s19, 3
      %p121 = por %p119, %p120
      %p122 = scmp.ne.s32.totalorder %s113, %s114
      %p123 = scmp.eq.s32.totalorder %s19, 0
      %p124 = por %p122, %p123
      %p125 = scmp.ne.s32.totalorder %s113, %s114
      %p126 = scmp.eq.s32.totalorder %s20, 3
      %p127 = por %p125, %p126
      %p129 = scmp.ne.s32.totalorder %s114, %s128
      %p130 = scmp.eq.s32.totalorder %s20, 0
      %p131 = por %p129, %p130
      %s132 = ssub.s32 %s14, %s21
      %p133 = scmp.eq.s32.totalorder %s132, 0
      %s135 = sadd.s32 %s134, 1
      %s136 = scalar_select %p133, %s134, %s135
      %p139 = pneg %p133
      %p140 = scmp.eq.s32.totalorder %s14, 3
      %p141 = por %p139, %p140
      %p142 = scmp.ne.s32.totalorder %s134, %s137
      %p143 = scmp.eq.s32.totalorder %s14, 0
      %p144 = por %p142, %p143
      %p145 = scmp.ne.s32.totalorder %s134, %s137
      %p146 = scmp.eq.s32.totalorder %s19, 3
      %p147 = por %p145, %p146
      %p148 = scmp.ne.s32.totalorder %s137, %s138
      %p149 = scmp.eq.s32.totalorder %s19, 0
      %p150 = por %p148, %p149
      %p151 = scmp.ne.s32.totalorder %s137, %s138
      %p152 = scmp.eq.s32.totalorder %s20, 3
      %p153 = por %p151, %p152
      %p155 = scmp.ne.s32.totalorder %s138, %s154
      %p156 = scmp.eq.s32.totalorder %s20, 0
      %p157 = por %p155, %p156
      %p158 = scmp.le.s32.totalorder 1, %s14
      %p159 = scmp.lt.s32.totalorder %s14, 5
      %p160 = pnand %p158, %p159
      %p161 = pneg %p160
      // Predicated region
      $region9: #{tpu_custom_call.1} parent=5 // pred_check
        _
      $region10: #{tpu_custom_call.1} parent=5 // pred_check_branch
        %163 = sbr.rel (%p160) target = $region12
      $region11: #{tpu_custom_call.1} parent=5 // pred_region
        %s164 = ssub.s32 %s14, 1
        // Predicated region
        $region13: #{tpu_custom_call.1} parent=11 // pred_check
          %p165 = pneg %p61
        $region14: #{tpu_custom_call.1} parent=11 // pred_check_branch
          %167 = sbr.rel (%p165) target = $region16
        $region15: #{tpu_custom_call.1} parent=11 // pred_region
          _
        $region16: #{tpu_custom_call.1} parent=11 // pred_fallthru
          _
        // Predicated region
        $region17: #{tpu_custom_call.1} parent=11 // pred_check
          %p168 = pneg %p82
        $region18: #{tpu_custom_call.1} parent=11 // pred_check_branch
          %170 = sbr.rel (%p168) target = $region20
        $region19: #{tpu_custom_call.1} parent=11 // pred_region
          _
        $region20: #{tpu_custom_call.1} parent=11 // pred_fallthru
          _
        // Predicated region
        $region21: #{tpu_custom_call.1} parent=11 // pred_check
          %p171 = pneg %p103
        $region22: #{tpu_custom_call.1} parent=11 // pred_check_branch
          %173 = sbr.rel (%p171) target = $region24
        $region23: #{tpu_custom_call.1} parent=11 // pred_region
          _
        $region24: #{tpu_custom_call.1} parent=11 // pred_fallthru
          _
        // Predicated region
        $region25: #{tpu_custom_call.1} parent=11 // pred_check
          %p174 = pneg %p124
        $region26: #{tpu_custom_call.1} parent=11 // pred_check_branch
          %176 = sbr.rel (%p174) target = $region28
        $region27: #{tpu_custom_call.1} parent=11 // pred_region
          _
        $region28: #{tpu_custom_call.1} parent=11 // pred_fallthru
          _
      $region12: #{tpu_custom_call.1} parent=5 // pred_fallthru
        _
      %p177 = scmp.lt.s32.totalorder %s14, 4
      // Predicated region
      $region29: #{tpu_custom_call.1} parent=5 // pred_check
        %p178 = pneg %p177
      $region30: #{tpu_custom_call.1} parent=5 // pred_check_branch
        %180 = sbr.rel (%p178) target = $region32
      $region31: #{tpu_custom_call.1} parent=5 // pred_region
        // Predicated region
        $region33: #{tpu_custom_call.1} parent=31 // pred_check
          %p181 = pneg %p34
        $region34: #{tpu_custom_call.1} parent=31 // pred_check_branch
          %183 = sbr.rel (%p181) target = $region36
        $region35: #{tpu_custom_call.1} parent=31 // pred_region
          %s184 = smul.u32 8, %s14
          %p185 = scmp.lt.s32.totalorder %s184, 31
          %s186 = scalar_select %p185, %s184, 31
          %s187 = smul.addr %s186, 4
          %s188 = scalar_lea.vmem %s0, %s187
          %s189 = smul.u32 8, %s14
        $region36: #{tpu_custom_call.1} parent=31 // pred_fallthru
          _
      $region32: #{tpu_custom_call.1} parent=5 // pred_fallthru
        _
      %p190 = scmp.le.s32.totalorder 1, %s14
      %p191 = scmp.lt.s32.totalorder %s14, 5
      %p192 = pnand %p190, %p191
      %p193 = pneg %p192
      // Predicated region
      $region37: #{tpu_custom_call.1} parent=5 // pred_check
        _
      $region38: #{tpu_custom_call.1} parent=5 // pred_check_branch
        %195 = sbr.rel (%p192) target = $region40
      $region39: #{tpu_custom_call.1} parent=5 // pred_region
        %s196 = ssub.s32 %s14, 1
        %s197 = smul.u32 8, %s19
        %p198 = scmp.lt.s32.totalorder %s197, 31
        %s199 = scalar_select %p198, %s197, 31
        %s200 = smul.addr %s199, 4
        %s201 = scalar_lea.vmem %s0, %s200
        %p202 = pneg %p40
        %p203 = pneg %p37
        %p204 = pneg %p61
        %p205 = pneg %p58
        %p206 = pneg %p82
        %p207 = pneg %p79
        %p208 = pneg %p103
        %p209 = pneg %p100
        %p210 = pneg %p124
        %p211 = pneg %p121
        %p212 = pneg %p150
        %p213 = pneg %p147
        %s214 = sand.u32 %s137, 1
        %s215 = scalar_lea.sflag [#allocation3], %s214
        %s216 = sand.u32 %s137, 1
        %s217 = smul.addr %s216, 64
        %s218 = scalar_lea.vmem [#allocation2], %s217
        %s219 = smul.u32 8, %s19
        %p220 = scmp.lt.s32.totalorder %s219, 31
        %s221 = scalar_select %p220, %s219, 31
        %s222 = smul.addr %s221, 4
        %s223 = scalar_lea.vmem %s0, %s222
        %s224 = smul.u32 8, %s19
        %s225 = smul.u32 8, %s19
        %v227 = vld [vmem:[%s223] sm:$0xf]
        %v228 = vld [vmem:[%s223 + $0x4] sm:$0xf]
        %v229 = vld [vmem:[%s223 + $0x8] sm:$0xf]
        %v230 = vld [vmem:[%s223 + $0xc] sm:$0xf]
        %v231 = vld [vmem:[%s223 + $0x10] sm:$0xf]
        %v232 = vld [vmem:[%s223 + $0x14] sm:$0xf]
        %v233 = vld [vmem:[%s223 + $0x18] sm:$0xf]
        %v234 = vld [vmem:[%s223 + $0x1c] sm:$0xf]
        %v235 = vld [vmem:[%s1] sm:$0xf]
        %v236 = vld [vmem:[%s1 + $0x4] sm:$0xf]
        %v237 = vld [vmem:[%s1 + $0x8] sm:$0xf]
        %v238 = vld [vmem:[%s1 + $0xc] sm:$0xf]
        %v239 = vld [vmem:[%s2] sm:$0x1]
        %v241 = vperm.slane %v239, 0
        %v251 = vunpack.c.l.b16 %v227
        %v252 = vunpack.c.l.b16 %v228
        %v253 = vunpack.c.l.b16 %v229
        %v254 = vunpack.c.l.b16 %v230
        %v255 = vunpack.c.l.b16 %v231
        %v256 = vunpack.c.l.b16 %v232
        %v257 = vunpack.c.l.b16 %v233
        %v258 = vunpack.c.l.b16 %v234
        %v259 = vpack.c.b16 %v252, %v251
        %v260 = vpack.c.b16 %v254, %v253
        %v261 = vpack.c.b16 %v256, %v255
        %v262 = vpack.c.b16 %v258, %v257
        %v267 = vunpack.c.l.b16 %v235
        %v268 = vunpack.c.l.b16 %v236
        %v269 = vunpack.c.l.b16 %v237
        %v270 = vunpack.c.l.b16 %v238
        %v271 = vpack.c.b16 %v268, %v267
        %v272 = vpack.c.b16 %v270, %v269
        %vm275 = vcmask 261120
        %v277 = vsel %vm275, %v259, 0
        %v280 = vsel %vm275, %v260, 0
        %v283 = vsel %vm275, %v261, 0
        %v286 = vsel %vm275, %v262, 0
        %288 = vmatpush.bf16.msra.mxu0 0
        %289 = vmatpush.bf16.msra.mxu0 0
        %290 = vmatpush.bf16.msra.mxu0 0
        %291 = vmatpush.bf16.msra.mxu0 0
        %292 = vmatpush.bf16.msra.mxu0 0
        %293 = vmatpush.bf16.msra.mxu0 0
        %294 = vmatpush.bf16.msra.mxu0 %v272
        %295 = vmatpush.bf16.msra.mxu0 %v271
        %296 = vmatmul.bf16.gmra.mxu0 %v277
        %v297 = vpop.f32.mrf.mxu0
        %v298 = vadd.f32 %v241, %v297
        %v299 = vpop.f32.mrf.mxu0
        %v300 = vadd.f32 %v241, %v299
        %301 = vmatmul.bf16.gmra.mxu0 %v280
        %v302 = vpop.f32.mrf.mxu0
        %v303 = vadd.f32 %v241, %v302
        %v304 = vpop.f32.mrf.mxu0
        %v305 = vadd.f32 %v241, %v304
        %306 = vmatmul.bf16.gmra.mxu0 %v283
        %v307 = vpop.f32.mrf.mxu0
        %v308 = vadd.f32 %v241, %v307
        %v309 = vpop.f32.mrf.mxu0
        %v310 = vadd.f32 %v241, %v309
        %311 = vmatmul.bf16.gmra.mxu0 %v286
        %v312 = vpop.f32.mrf.mxu0
        %v313 = vadd.f32 %v241, %v312
        %v314 = vpop.f32.mrf.mxu0
        %v315 = vadd.f32 %v241, %v314
        %316 = vdwg.mxu0
        %v317 = vmax.f32 %v298, 0.0
        %v318 = vmax.f32 %v300, 0.0
        %v319 = vmax.f32 %v303, 0.0
        %v320 = vmax.f32 %v305, 0.0
        %v321 = vmax.f32 %v308, 0.0
        %v322 = vmax.f32 %v310, 0.0
        %v323 = vmax.f32 %v313, 0.0
        %v324 = vmax.f32 %v315, 0.0
        %v325 = vpack.c.bf16 %v318, %v317
        %v326 = vpack.c.bf16 %v320, %v319
        %v327 = vpack.c.bf16 %v322, %v321
        %v328 = vpack.c.bf16 %v324, %v323
        %v329 = vld [vmem:[%s3] sm:$0xf]
        %v330 = vld [vmem:[%s3 + $0x4] sm:$0xf]
        %v331 = vld [vmem:[%s3 + $0x8] sm:$0xf]
        %v332 = vld [vmem:[%s3 + $0xc] sm:$0xf]
        %v333 = vld [vmem:[%s3 + $0x10] sm:$0xf]
        %v334 = vld [vmem:[%s3 + $0x14] sm:$0xf]
        %v335 = vld [vmem:[%s3 + $0x18] sm:$0xf]
        %v336 = vld [vmem:[%s3 + $0x1c] sm:$0xf]
        %v337 = vld [vmem:[%s3 + $0x20] sm:$0xf]
        %v338 = vld [vmem:[%s3 + $0x24] sm:$0xf]
        %v339 = vld [vmem:[%s3 + $0x28] sm:$0xf]
        %v340 = vld [vmem:[%s3 + $0x2c] sm:$0xf]
        %v341 = vld [vmem:[%s3 + $0x30] sm:$0xf]
        %v342 = vld [vmem:[%s3 + $0x34] sm:$0xf]
        %v343 = vld [vmem:[%s3 + $0x38] sm:$0xf]
        %v344 = vld [vmem:[%s3 + $0x3c] sm:$0xf]
        %v345 = vld [vmem:[%s4] sm:$0x1]
        %v347 = vperm.slane %v345, 0
        %v365 = vunpack.c.l.b16 %v329
        %v366 = vunpack.c.l.b16 %v330
        %v367 = vunpack.c.l.b16 %v331
        %v368 = vunpack.c.l.b16 %v332
        %v369 = vunpack.c.l.b16 %v333
        %v370 = vunpack.c.l.b16 %v334
        %v371 = vunpack.c.l.b16 %v335
        %v372 = vunpack.c.l.b16 %v336
        %v373 = vunpack.c.l.b16 %v337
        %v374 = vunpack.c.l.b16 %v338
        %v375 = vunpack.c.l.b16 %v339
        %v376 = vunpack.c.l.b16 %v340
        %v377 = vunpack.c.l.b16 %v341
        %v378 = vunpack.c.l.b16 %v342
        %v379 = vunpack.c.l.b16 %v343
        %v380 = vunpack.c.l.b16 %v344
        %v381 = vpack.c.b16 %v366, %v365
        %v382 = vpack.c.b16 %v368, %v367
        %v383 = vpack.c.b16 %v370, %v369
        %v384 = vpack.c.b16 %v372, %v371
        %v385 = vpack.c.b16 %v374, %v373
        %v386 = vpack.c.b16 %v376, %v375
        %v387 = vpack.c.b16 %v378, %v377
        %v388 = vpack.c.b16 %v380, %v379
        %397 = vmatpush.bf16.msra.mxu0 %v388
        %398 = vmatpush.bf16.msra.mxu0 %v387
        %399 = vmatpush.bf16.msra.mxu0 %v386
        %400 = vmatpush.bf16.msra.mxu0 %v385
        %401 = vmatpush.bf16.msra.mxu0 %v384
        %402 = vmatpush.bf16.msra.mxu0 %v383
        %403 = vmatpush.bf16.msra.mxu0 %v382
        %404 = vmatpush.bf16.msra.mxu0 %v381
        %405 = vmatmul.bf16.gmra.mxu0 %v325
        %v406 = vpop.f32.mrf.mxu0
        %v407 = vadd.f32 %v347, %v406
        %v408 = vpop.f32.mrf.mxu0
        %v409 = vadd.f32 %v347, %v408
        %410 = vmatmul.bf16.gmra.mxu0 %v326
        %v411 = vpop.f32.mrf.mxu0
        %v412 = vadd.f32 %v347, %v411
        %v413 = vpop.f32.mrf.mxu0
        %v414 = vadd.f32 %v347, %v413
        %415 = vmatmul.bf16.gmra.mxu0 %v327
        %v416 = vpop.f32.mrf.mxu0
        %v417 = vadd.f32 %v347, %v416
        %v418 = vpop.f32.mrf.mxu0
        %v419 = vadd.f32 %v347, %v418
        %420 = vmatmul.bf16.gmra.mxu0 %v328
        %v421 = vpop.f32.mrf.mxu0
        %v422 = vadd.f32 %v347, %v421
        %v423 = vpop.f32.mrf.mxu0
        %v424 = vadd.f32 %v347, %v423
        %425 = vdwg.mxu0
        %v426 = vsub.f32 0.0, %v407
        %v427 = vsub.f32 0.0, %v409
        %v428 = vsub.f32 0.0, %v412
        %v429 = vsub.f32 0.0, %v414
        %v430 = vsub.f32 0.0, %v417
        %v431 = vsub.f32 0.0, %v419
        %v432 = vsub.f32 0.0, %v422
        %v433 = vsub.f32 0.0, %v424
        %v434 = vmul.f32 %v426, 1.442695
        %v435 = vpow.pop %v434
        %v436 = vmul.f32 %v427, 1.442695
        %v437 = vpow.pop %v436
        %v438 = vmul.f32 %v428, 1.442695
        %v439 = vpow.pop %v438
        %v440 = vmul.f32 %v429, 1.442695
        %v441 = vpow.pop %v440
        %v442 = vmul.f32 %v430, 1.442695
        %v443 = vpow.pop %v442
        %v444 = vmul.f32 %v431, 1.442695
        %v445 = vpow.pop %v444
        %v446 = vmul.f32 %v432, 1.442695
        %v447 = vpow.pop %v446
        %v448 = vmul.f32 %v433, 1.442695
        %v449 = vpow.pop %v448
        %v450 = vadd.f32 %v435, 1.0
        %v451 = vadd.f32 %v437, 1.0
        %v452 = vadd.f32 %v439, 1.0
        %v453 = vadd.f32 %v441, 1.0
        %v454 = vadd.f32 %v443, 1.0
        %v455 = vadd.f32 %v445, 1.0
        %v456 = vadd.f32 %v447, 1.0
        %v457 = vadd.f32 %v449, 1.0
        %v458 = vrcp.pop %v450
        %v459 = vrcp.pop %v451
        %v460 = vrcp.pop %v452
        %v461 = vrcp.pop %v453
        %v462 = vrcp.pop %v454
        %v463 = vrcp.pop %v455
        %v464 = vrcp.pop %v456
        %v465 = vrcp.pop %v457
        %466 = vst [vmem:[%s218] sm:$0xff] %v458
        %467 = vst [vmem:[%s218 + $0x8] sm:$0xff] %v459
        %468 = vst [vmem:[%s218 + $0x10] sm:$0xff] %v460
        %469 = vst [vmem:[%s218 + $0x18] sm:$0xff] %v461
        %470 = vst [vmem:[%s218 + $0x20] sm:$0xff] %v462
        %471 = vst [vmem:[%s218 + $0x28] sm:$0xff] %v463
        %472 = vst [vmem:[%s218 + $0x30] sm:$0xff] %v464
        %473 = vst [vmem:[%s218 + $0x38] sm:$0xff] %v465
        %s474 = sand.u32 %s137, 1
        %s475 = scalar_lea.sflag [#allocation3], %s474
        %s476 = sand.u32 %s137, 1
        %s477 = smul.addr %s476, 64
        %s478 = scalar_lea.vmem [#allocation2], %s477
        // Predicated region
        $region41: #{tpu_custom_call.1} parent=39 // pred_check
          %p479 = pneg %p147
        $region42: #{tpu_custom_call.1} parent=39 // pred_check_branch
          %481 = sbr.rel (%p479) target = $region44
        $region43: #{tpu_custom_call.1} parent=39 // pred_region
          %s482 = smul.u32 8, %s19
          %484 = vsyncadd %s475, 0
          %s485 = smul.addr %s482, 8
          %s486 = scalar_lea.hbm %s5, %s485
          %s487 = sshll.u32 %s478, 4
          %s488 = int_to_ptr.vmem [resolvable:$true] %s487
          %s489 = sshll.u32 %s486, 4
          %s490 = int_to_ptr.hbm [resolvable:$true] %s489
          %495 = dma.vmem_to_hbm [thread:$0]  %s488, 1024, %s490, %s475, 128, 128, 8
        $region44: #{tpu_custom_call.1} parent=39 // pred_fallthru
          _
      $region40: #{tpu_custom_call.1} parent=5 // pred_fallthru
        _
      %p496 = scmp.le.s32.totalorder 2, %s14
      // Predicated region
      $region45: #{tpu_custom_call.1} parent=5 // pred_check
        %p497 = pneg %p496
      $region46: #{tpu_custom_call.1} parent=5 // pred_check_branch
        %499 = sbr.rel (%p497) target = $region48
      $region47: #{tpu_custom_call.1} parent=5 // pred_region
        %s500 = ssub.s32 %s14, 2
        // Predicated region
        $region49: #{tpu_custom_call.1} parent=47 // pred_check
          %p501 = pneg %p153
        $region50: #{tpu_custom_call.1} parent=47 // pred_check_branch
          %503 = sbr.rel (%p501) target = $region52
        $region51: #{tpu_custom_call.1} parent=47 // pred_region
          %s504 = sand.u32 %s138, 1
          %s505 = scalar_lea.sflag [#allocation3], %s504
          %s506 = sand.u32 %s138, 1
          %s507 = smul.addr %s506, 64
          %s508 = scalar_lea.vmem [#allocation2], %s507
          %510 = dma.done %s505, 1024
        $region52: #{tpu_custom_call.1} parent=47 // pred_fallthru
          _
      $region48: #{tpu_custom_call.1} parent=5 // pred_fallthru
        _
    $region6: #{tpu_custom_call.1} parent=1 // loop_footer
      %s18 = sadd.s32 1, %s14
    $region7: #{tpu_custom_call.1} parent=1 // loop_footer_branch
      %13 = sbr.rel target = $region3
    $region8: #{tpu_custom_call.1} parent=1 // loop_exit
      _
    %511 = vsyncpa [#allocation3], 1
    %s512 = scalar_lea.sflag [#allocation3], 1
    %513 = vsyncpa %s512, 1

</llo_original>
